<compile_context>
chip_gen: v5e
topology: v5e:2x2
jax: 0.10.0
libtpu: 0.0.40
codegen_flags: <defaults>
</compile_context>

<pallas_src>
import functools

import numpy as np

import jax
import jax.numpy as jnp
from jax.experimental import pallas as pl
from jax.experimental.pallas import tpu as pltpu

LRELU_SLOPE = 0.01
_LANES = 128

# (c_in, c_out, kernel, stride, groups, padding, out_fold_F, apply_leaky_relu)
SUBMSD_CONVS = [
    (1,    16,   15, 1, 1,   7,  8, True),   # fold=8 -> 128-lane output tile
    (16,   64,   41, 4, 4,   20, 1, True),
    (64,   256,  41, 4, 16,  20, 1, True),
    (256,  1024, 41, 4, 64,  20, 1, True),
    (1024, 1024, 41, 4, 256, 20, 1, True),
    (1024, 1024, 5,  1, 1,   20, 1, True),
    (1024, 1,    3,  1, 1,   1,  1, False),  # finisher (no activation)
]


def _vmem_limit_bytes():
    cap = 64 * 1024 * 1024  # conservative fallback (v7x physical VMEM per TC)
    try:
        info = pltpu.get_tpu_info()
        cap = int(getattr(info, "vmem_capacity_bytes", cap))
    except Exception:
        pass
    return int(min(cap * 3 // 4, 96 * 1024 * 1024))


_VMEM_LIMIT = _vmem_limit_bytes()


def _group_tile(groups, fold, cout_g):
    gt = max(1, min(groups, _LANES // max(1, fold * cout_g)))
    while groups % gt:
        gt -= 1
    return gt


def _fold_taps(kernel_size, stride, fold):
    s_fold = fold * stride
    return ((fold - 1) * stride + kernel_size - 1) // s_fold + 1


# ----------------------------------------------------------------------------
# Pallas kernel
# ----------------------------------------------------------------------------
def _conv_kernel(x_ref, w_ref, b_ref, o_ref, acc_ref, *, n_taps, l_out, apply_act):
    # x_ref : (1, Lr, GT*Ke)        phase-folded, group-ordered input slab (bf16)
    # w_ref : (1, Jf, GT*Ke, GT*Ne) per-tap block-diagonal weights (bf16)
    # b_ref : (1, 1,  GT*Ne)        bias (f32), lane-dense
    # o_ref : (1, Lo, GT*Ne)        output tile (bf16)
    # acc   : (Lo, GT*Ne)           f32 accumulator scratch
    acc_ref[...] = jnp.broadcast_to(b_ref[0], acc_ref.shape)
    for j in range(n_taps):  # <= 11 taps, static unroll; taps gathered from VMEM
        acc_ref[...] += jnp.dot(x_ref[0, j:j + l_out, :], w_ref[0, j],
                                preferred_element_type=jnp.float32)
    acc = acc_ref[...]
    if apply_act:
        acc = jnp.where(acc > 0, acc, LRELU_SLOPE * acc)
    o_ref[0] = acc.astype(o_ref.dtype)


# ----------------------------------------------------------------------------
# Conv wrapper (pallas_call + cheap JAX glue)
# ----------------------------------------------------------------------------
def conv1d_grouped(x, w_packed, b_packed, *, kernel_size, stride, padding,
                   groups, fold, apply_act):
    """Grouped Conv1d (+ optional leaky_relu). x: (N, L, C_in) -> (N, L_out, C_out)."""
    N, L, C_in = x.shape
    G = groups
    cin_g = C_in // G
    S = fold * stride
    Jf = _fold_taps(kernel_size, stride, fold)

    n_t, jf_w, Ktile, Ntile = w_packed.shape
    GT = G // n_t
    cout_g = (n_t * Ntile) // (G * fold)
    assert jf_w == Jf and Ktile == GT * S * cin_g

    L_out = (L + 2 * padding - kernel_size) // stride + 1
    L_outF = -(-L_out // fold)
    Lr = L_outF + Jf - 1
    Lps = Lr * S

    # pad (PyTorch zero padding) + phase-fold (reshape) + group-major reorder.
    pad_r = max(0, Lps - (L + padding))
    xp = jnp.pad(x, ((0, 0), (padding, pad_r), (0, 0)))[:, :Lps, :]
    xr = xp.reshape(N, Lr, S, G, cin_g)
    xr = jnp.transpose(xr, (0, 1, 3, 2, 4)).reshape(N, Lr, G * S * cin_g)
    xr = xr.astype(jnp.bfloat16)

    kern = functools.partial(_conv_kernel, n_taps=Jf, l_out=L_outF,
                             apply_act=apply_act)
    out = pl.pallas_call(
        kern,
        out_shape=jax.ShapeDtypeStruct((N, L_outF, n_t * Ntile), jnp.bfloat16),
        grid=(n_t, N),  # batch innermost -> weight block is DMA'd once per tile
        in_specs=[
            pl.BlockSpec((1, Lr, Ktile), lambda g, b: (b, 0, g)),
            pl.BlockSpec((1, Jf, Ktile, Ntile), lambda g, b: (g, 0, 0, 0)),
            pl.BlockSpec((1, 1, Ntile), lambda g, b: (g, 0, 0)),
        ],
        out_specs=pl.BlockSpec((1, L_outF, Ntile), lambda g, b: (b, 0, g)),
        scratch_shapes=[pltpu.VMEM((L_outF, Ntile), jnp.float32)],
        compiler_params=pltpu.CompilerParams(
            dimension_semantics=("parallel", "parallel"),
            vmem_limit_bytes=_VMEM_LIMIT),
    )(xr, w_packed, b_packed)

    # (N, L_outF, G, F, cout_g) -> (N, L_outF*F, G*cout_g).  The transpose is
    # layout-trivial because fold > 1 only when groups == 1.
    y = out.reshape(N, L_outF, G, fold, cout_g)
    y = jnp.transpose(y, (0, 1, 3, 2, 4)).reshape(N, L_outF * fold, G * cout_g)
    return y[:, :L_out, :]
    # TODO(synk): for extremely long audio (minutes), add an L_out grid axis
    # with overlapping input windows; at typical T the full-L slabs fit VMEM.


def avgpool1d(x):
    """nn.AvgPool1d(4, stride=2, padding=2), count_include_pad=True. (N, L) -> (N, L//2+1)."""
    N, L = x.shape
    L_out = L // 2 + 1
    xp = jnp.pad(x, ((0, 0), (2, 2)))
    taps = [jax.lax.slice(xp, (0, k), (N, k + 2 * (L_out - 1) + 1), (1, 2))
            for k in range(4)]
    return (taps[0] + taps[1] + taps[2] + taps[3]) * 0.25


# ----------------------------------------------------------------------------
# Weight packing + init (deterministic, synthetic)
# ----------------------------------------------------------------------------
def pack_conv(w, b, *, kernel_size, stride, groups, fold, group_tile):
    """PyTorch Conv1d weight (C_out, C_in/G, K) + bias (C_out,) ->
       per-tap block-diagonal bf16 weight (G/GT, Jf, GT*S*cin_g, GT*F*cout_g)
       and f32 bias (G/GT, 1, GT*F*cout_g)."""
    w = np.asarray(w, np.float32)
    b = np.asarray(b, np.float32)
    C_out, cin_g, K = w.shape
    G, GT, F = groups, group_tile, fold
    cout_g = C_out // G
    S = F * stride
    Jf = _fold_taps(K, stride, F)
    Ke, Ne = S * cin_g, F * cout_g

    wg = w.reshape(G, cout_g, cin_g, K)
    wf = np.zeros((G, Jf, S, cin_g, F, cout_g), np.float32)
    for j in range(Jf):
        for m in range(S):
            for q in range(F):
                k = j * S + m - q * stride
                if 0 <= k < K:
                    wf[:, j, m, :, q, :] = np.transpose(wg[:, :, :, k], (0, 2, 1))
    wf = wf.reshape(G, Jf, Ke, Ne)

    n_t = G // GT
    wbd = np.zeros((n_t, Jf, GT * Ke, GT * Ne), np.float32)
    wt = wf.reshape(n_t, GT, Jf, Ke, Ne)
    for gi in range(GT):
        wbd[:, :, gi * Ke:(gi + 1) * Ke, gi * Ne:(gi + 1) * Ne] = wt[:, gi]

    bf = np.broadcast_to(b.reshape(n_t, GT, 1, cout_g), (n_t, GT, F, cout_g))
    bf = np.ascontiguousarray(bf).reshape(n_t, 1, GT * Ne)
    return jnp.asarray(wbd, jnp.bfloat16), jnp.asarray(bf, jnp.float32)


def init_conv(key, cfg):
    # TODO(synk): weight_norm / spectral_norm folding (power iteration state) —
    # here we just generate a plain effective Conv1d weight.
    c_in, c_out, K, s, G, pad, F, act = cfg
    cin_g, cout_g = c_in // G, c_out // G
    kw, kb = jax.random.split(key)
    bound = 1.0 / (cin_g * K) ** 0.5
    w = jax.random.uniform(kw, (c_out, cin_g, K), jnp.float32, -bound, bound)
    b = jax.random.uniform(kb, (c_out,), jnp.float32, -bound, bound)
    return pack_conv(w, b, kernel_size=K, stride=s, groups=G, fold=F,
                     group_tile=_group_tile(G, F, cout_g))


def init_sub_msd(key):
    keys = jax.random.split(key, len(SUBMSD_CONVS))
    return [init_conv(k, cfg) for k, cfg in zip(keys, SUBMSD_CONVS)]


def init_msd(key):
    return [init_sub_msd(k) for k in jax.random.split(key, 3)]


# ----------------------------------------------------------------------------
# Forward pass (mirrors the PyTorch module)
# ----------------------------------------------------------------------------
def sub_msd_forward(layers, x):
    feats = []
    for (wp, bp), (ci, co, K, s, G, pad, F, act) in zip(layers, SUBMSD_CONVS):
        x = conv1d_grouped(x, wp, bp, kernel_size=K, stride=s, padding=pad,
                           groups=G, fold=F, apply_act=act)
        feats.append(x)
    return x, feats


def msd_forward(params, audio_gen, audio_gt):
    """audio_gen, audio_gt: (B, 1, T) f32 (PyTorch NCL). Returns NCL f32 outputs."""
    B = audio_gen.shape[0]
    # gen/gt share every sub-discriminator's weights -> batch them together.
    a = jnp.concatenate([audio_gen[:, 0, :], audio_gt[:, 0, :]], axis=0)
    out_gen, feat_gen, out_gt, feat_gt = [], [], [], []
    for i, sub in enumerate(params):
        if i > 0:
            a = avgpool1d(a)
        o, fs = sub_msd_forward(sub, a[:, :, None])
        o = jnp.transpose(o, (0, 2, 1)).astype(jnp.float32)
        fs = [jnp.transpose(f, (0, 2, 1)).astype(jnp.float32) for f in fs]
        out_gen.append(o[:B])
        out_gt.append(o[B:])
        feat_gen.append([f[:B] for f in fs])
        feat_gt.append([f[B:] for f in fs])
    return out_gen, feat_gen, out_gt, feat_gt


# ----------------------------------------------------------------------------
# Self-check of the Pallas conv against XLA's grouped conv (bf16-rounded inputs)
# ----------------------------------------------------------------------------
def _reference_conv(x, w, b, *, stride, padding, groups, apply_act):
    y = jax.lax.conv_general_dilated(
        x, jnp.transpose(w, (2, 1, 0)),
        window_strides=(stride,), padding=[(padding, padding)],
        dimension_numbers=("NWC", "WIO", "NWC"),
        feature_group_count=groups,
        precision=jax.lax.Precision.HIGHEST,
        preferred_element_type=jnp.float32)
    y = y + b[None, None, :]
    if apply_act:
        y = jnp.where(y > 0, y, LRELU_SLOPE * y)
    return y


def _check_kernels(key):
    test_L = [50, 30, 30, 18, 9, 4, 10]
    for cfg, L in zip(SUBMSD_CONVS, test_L):
        c_in, c_out, K, s, G, pad, F, act = cfg
        cin_g, cout_g = c_in // G, c_out // G
        key, k1, k2, k3 = jax.random.split(key, 4)
        bound = 1.0 / (cin_g * K) ** 0.5
        w = jax.random.uniform(k1, (c_out, cin_g, K), jnp.float32, -bound, bound)
        b = jax.random.uniform(k2, (c_out,), jnp.float32, -bound, bound)
        x = jax.random.normal(k3, (2, L, c_in), jnp.float32)
        xb = x.astype(jnp.bfloat16).astype(jnp.float32)
        wb = w.astype(jnp.bfloat16).astype(jnp.float32)
        ref = _reference_conv(xb, wb, b, stride=s, padding=pad, groups=G,
                              apply_act=act)
        wp, bp = pack_conv(w, b, kernel_size=K, stride=s, groups=G, fold=F,
                           group_tile=_group_tile(G, F, cout_g))
        got = conv1d_grouped(x, wp, bp, kernel_size=K, stride=s, padding=pad,
                             groups=G, fold=F, apply_act=act).astype(jnp.float32)
        err = float(jnp.max(jnp.abs(got - ref)))
        scale = float(jnp.max(jnp.abs(ref)))
        assert err <= 1e-2 * scale + 1e-2, (
            f"conv mismatch for cfg={cfg}: err={err}, scale={scale}")


if __name__ == "__main__":
    key = jax.random.PRNGKey(0)
    ckey, pkey, k_gen, k_gt = jax.random.split(key, 4)

    # per-layer numerical check of the Pallas conv (bf16 compute, f32 accum)
    _check_kernels(ckey)

    params = init_msd(pkey)

    B, T = 2, 128
    audio_gen = jax.random.normal(k_gen, (B, 1, T), jnp.float32)
    audio_gt = jax.random.normal(k_gt, (B, 1, T), jnp.float32)

    fwd = jax.jit(msd_forward)
    out_gen, feat_gen, out_gt, feat_gt = fwd(params, audio_gen, audio_gt)
    jax.block_until_ready((out_gen, feat_gen, out_gt, feat_gt))

    # structural sanity (matches the PyTorch module semantics)
    assert len(out_gen) == 3 and len(out_gt) == 3
    assert all(len(f) == 7 for f in feat_gen) and all(len(f) == 7 for f in feat_gt)
    assert all(o.shape[0] == B and o.shape[1] == 1 for o in out_gen)
    assert all(o.shape == g.shape for o, g in zip(out_gen, out_gt))

    print("KERNEL_OK")
</pallas_src>

<mosaic_0001>
module attributes {stable_mosaic.version = 11 : i64} {
  func.func @_conv_kernel(%arg0: i32, %arg1: i32, %arg2: memref<1x9x8xbf16, #tpu.memory_space<vmem>>, %arg3: memref<1x3x8x128xbf16, #tpu.memory_space<vmem>>, %arg4: memref<1x1x128xf32, #tpu.memory_space<vmem>>, %arg5: memref<1x7x128xbf16, #tpu.memory_space<vmem>>, %arg6: memref<7x128xf32, #tpu.memory_space<vmem>>) attributes {dimension_semantics = [#tpu.dimension_semantics<parallel>, #tpu.dimension_semantics<parallel>], iteration_bounds = array<i64: 1, 2>, scalar_prefetch = 0 : i64, scratch_operands = 1 : i64, tpu.core_type = #tpu.core_type<tc>, window_params = [{transform_indices = @transform_0, window_bounds = array<i64: 1, 9, 8>}, {transform_indices = @transform_1, window_bounds = array<i64: 1, 3, 8, 128>}, {transform_indices = @transform_2, window_bounds = array<i64: 1, 1, 128>}, {transform_indices = @transform_3, window_bounds = array<i64: 1, 7, 128>}]} {
    %c0 = arith.constant 0 : index
    %c0_0 = arith.constant 0 : index
    %c0_1 = arith.constant 0 : index
    %0 = vector.load %arg4[%c0, %c0_0, %c0_1] : memref<1x1x128xf32, #tpu.memory_space<vmem>>, vector<1x1x128xf32>
    %1 = vector.shape_cast %0 : vector<1x1x128xf32> to vector<1x128xf32>
    %2 = vector.shape_cast %1 : vector<1x128xf32> to vector<1x128xf32>
    %3 = vector.broadcast %2 : vector<1x128xf32> to vector<7x128xf32>
    %c0_2 = arith.constant 0 : index
    %c0_3 = arith.constant 0 : index
    %4 = vector.load %arg6[%c0_2, %c0_3] : memref<7x128xf32, #tpu.memory_space<vmem>>, vector<7x128xf32>
    tpu.vector_store %arg6[%c0_2, %c0_3], %3 {strides = array<i32>} : memref<7x128xf32, #tpu.memory_space<vmem>>, vector<7x128xf32>,
    %c0_4 = arith.constant 0 : index
    %c0_5 = arith.constant 0 : index
    %5 = vector.load %arg6[%c0_4, %c0_5] : memref<7x128xf32, #tpu.memory_space<vmem>>, vector<7x128xf32>
    %c0_6 = arith.constant 0 : index
    %c0_7 = arith.constant 0 : index
    %c0_8 = arith.constant 0 : index
    %6 = vector.load %arg2[%c0_6, %c0_7, %c0_8] : memref<1x9x8xbf16, #tpu.memory_space<vmem>>, vector<1x7x8xbf16>
    %7 = vector.shape_cast %6 : vector<1x7x8xbf16> to vector<7x8xbf16>
    %c0_9 = arith.constant 0 : index
    %c0_10 = arith.constant 0 : index
    %c0_11 = arith.constant 0 : index
    %c0_12 = arith.constant 0 : index
    %8 = vector.load %arg3[%c0_9, %c0_10, %c0_11, %c0_12] : memref<1x3x8x128xbf16, #tpu.memory_space<vmem>>, vector<1x1x8x128xbf16>
    %9 = vector.shape_cast %8 : vector<1x1x8x128xbf16> to vector<8x128xbf16>
    %cst = arith.constant dense<0.000000e+00> : vector<7x128xf32>
    %10 = tpu.matmul %7, %9, %cst {dimension_numbers = #tpu.dot_dimension_numbers<[1], [0], [0], [1], [0, 0, 1, 1], [], []>} : vector<7x8xbf16>, vector<8x128xbf16>, vector<7x128xf32> -> vector<7x128xf32>
    %11 = arith.addf %5, %10 : vector<7x128xf32>
    %c0_13 = arith.constant 0 : index
    %c0_14 = arith.constant 0 : index
    %12 = vector.load %arg6[%c0_13, %c0_14] : memref<7x128xf32, #tpu.memory_space<vmem>>, vector<7x128xf32>
    tpu.vector_store %arg6[%c0_13, %c0_14], %11 {strides = array<i32>} : memref<7x128xf32, #tpu.memory_space<vmem>>, vector<7x128xf32>,
    %c0_15 = arith.constant 0 : index
    %c0_16 = arith.constant 0 : index
    %13 = vector.load %arg6[%c0_15, %c0_16] : memref<7x128xf32, #tpu.memory_space<vmem>>, vector<7x128xf32>
    %c0_17 = arith.constant 0 : index
    %c1 = arith.constant 1 : index
    %c0_18 = arith.constant 0 : index
    %14 = vector.load %arg2[%c0_17, %c1, %c0_18] : memref<1x9x8xbf16, #tpu.memory_space<vmem>>, vector<1x7x8xbf16>
    %15 = vector.shape_cast %14 : vector<1x7x8xbf16> to vector<7x8xbf16>
    %c0_19 = arith.constant 0 : index
    %c1_20 = arith.constant 1 : index
    %c0_21 = arith.constant 0 : index
    %c0_22 = arith.constant 0 : index
    %16 = vector.load %arg3[%c0_19, %c1_20, %c0_21, %c0_22] : memref<1x3x8x128xbf16, #tpu.memory_space<vmem>>, vector<1x1x8x128xbf16>
    %17 = vector.shape_cast %16 : vector<1x1x8x128xbf16> to vector<8x128xbf16>
    %cst_23 = arith.constant dense<0.000000e+00> : vector<7x128xf32>
    %18 = tpu.matmul %15, %17, %cst_23 {dimension_numbers = #tpu.dot_dimension_numbers<[1], [0], [0], [1], [0, 0, 1, 1], [], []>} : vector<7x8xbf16>, vector<8x128xbf16>, vector<7x128xf32> -> vector<7x128xf32>
    %19 = arith.addf %13, %18 : vector<7x128xf32>
    %c0_24 = arith.constant 0 : index
    %c0_25 = arith.constant 0 : index
    %20 = vector.load %arg6[%c0_24, %c0_25] : memref<7x128xf32, #tpu.memory_space<vmem>>, vector<7x128xf32>
    tpu.vector_store %arg6[%c0_24, %c0_25], %19 {strides = array<i32>} : memref<7x128xf32, #tpu.memory_space<vmem>>, vector<7x128xf32>,
    %c0_26 = arith.constant 0 : index
    %c0_27 = arith.constant 0 : index
    %21 = vector.load %arg6[%c0_26, %c0_27] : memref<7x128xf32, #tpu.memory_space<vmem>>, vector<7x128xf32>
    %c0_28 = arith.constant 0 : index
    %c2 = arith.constant 2 : index
    %c0_29 = arith.constant 0 : index
    %22 = vector.load %arg2[%c0_28, %c2, %c0_29] : memref<1x9x8xbf16, #tpu.memory_space<vmem>>, vector<1x7x8xbf16>
    %23 = vector.shape_cast %22 : vector<1x7x8xbf16> to vector<7x8xbf16>
    %c0_30 = arith.constant 0 : index
    %c2_31 = arith.constant 2 : index
    %c0_32 = arith.constant 0 : index
    %c0_33 = arith.constant 0 : index
    %24 = vector.load %arg3[%c0_30, %c2_31, %c0_32, %c0_33] : memref<1x3x8x128xbf16, #tpu.memory_space<vmem>>, vector<1x1x8x128xbf16>
    %25 = vector.shape_cast %24 : vector<1x1x8x128xbf16> to vector<8x128xbf16>
    %cst_34 = arith.constant dense<0.000000e+00> : vector<7x128xf32>
    %26 = tpu.matmul %23, %25, %cst_34 {dimension_numbers = #tpu.dot_dimension_numbers<[1], [0], [0], [1], [0, 0, 1, 1], [], []>} : vector<7x8xbf16>, vector<8x128xbf16>, vector<7x128xf32> -> vector<7x128xf32>
    %27 = arith.addf %21, %26 : vector<7x128xf32>
    %c0_35 = arith.constant 0 : index
    %c0_36 = arith.constant 0 : index
    %28 = vector.load %arg6[%c0_35, %c0_36] : memref<7x128xf32, #tpu.memory_space<vmem>>, vector<7x128xf32>
    tpu.vector_store %arg6[%c0_35, %c0_36], %27 {strides = array<i32>} : memref<7x128xf32, #tpu.memory_space<vmem>>, vector<7x128xf32>,
    %c0_37 = arith.constant 0 : index
    %c0_38 = arith.constant 0 : index
    %29 = vector.load %arg6[%c0_37, %c0_38] : memref<7x128xf32, #tpu.memory_space<vmem>>, vector<7x128xf32>
    %cst_39 = arith.constant 0.000000e+00 : f32
    %30 = vector.broadcast %cst_39 : f32 to vector<7x128xf32>
    %31 = arith.cmpf ogt, %29, %30 : vector<7x128xf32>
    %cst_40 = arith.constant 0.00999999977 : f32
    %32 = vector.broadcast %cst_40 : f32 to vector<7x128xf32>
    %33 = arith.mulf %32, %29 : vector<7x128xf32>
    %34 = arith.select %31, %29, %33 : vector<7x128xi1>, vector<7x128xf32>
    %35 = arith.truncf %34 : vector<7x128xf32> to vector<7x128xbf16>
    %c0_41 = arith.constant 0 : index
    %c0_42 = arith.constant 0 : index
    %c0_43 = arith.constant 0 : index
    %36 = vector.load %arg5[%c0_41, %c0_42, %c0_43] : memref<1x7x128xbf16, #tpu.memory_space<vmem>>, vector<1x7x128xbf16>
    %37 = vector.shape_cast %36 : vector<1x7x128xbf16> to vector<7x128xbf16>
    %38 = vector.shape_cast %35 : vector<7x128xbf16> to vector<1x7x128xbf16>
    tpu.vector_store %arg5[%c0_41, %c0_42, %c0_43], %38 {strides = array<i32>} : memref<1x7x128xbf16, #tpu.memory_space<vmem>>, vector<1x7x128xbf16>,
    return
  }
  func.func @transform_0(%arg0: i32, %arg1: i32) -> (i32, i32, i32) {
    %c0_i32 = arith.constant 0 : i32
    %c0_i32_0 = arith.constant 0 : i32
    return %arg1, %c0_i32, %arg0 : i32, i32, i32
  }
  func.func @transform_1(%arg0: i32, %arg1: i32) -> (i32, i32, i32, i32) {
    %c0_i32 = arith.constant 0 : i32
    %c0_i32_0 = arith.constant 0 : i32
    %c0_i32_1 = arith.constant 0 : i32
    %c0_i32_2 = arith.constant 0 : i32
    return %arg0, %c0_i32, %c0_i32_0, %c0_i32_1 : i32, i32, i32, i32
  }
  func.func @transform_2(%arg0: i32, %arg1: i32) -> (i32, i32, i32) {
    %c0_i32 = arith.constant 0 : i32
    %c0_i32_0 = arith.constant 0 : i32
    %c0_i32_1 = arith.constant 0 : i32
    return %arg0, %c0_i32, %c0_i32_0 : i32, i32, i32
  }
  func.func @transform_3(%arg0: i32, %arg1: i32) -> (i32, i32, i32) {
    %c0_i32 = arith.constant 0 : i32
    %c0_i32_0 = arith.constant 0 : i32
    return %arg1, %c0_i32, %arg0 : i32, i32, i32
  }
}

</mosaic_0001>

<llo_original>
// kernel: tpu_custom_call.1
$region0: #{tpu_custom_call.1}
  #allocation0 [shape = 'u32[]', space=smem, size = 0x4, offset = 0x4, fixed_abs, tag = 'smem constant byte address 0x4 - core index']
  #allocation1 [shape = 'u32[72,128]{1,0:T(1,128)}', space=vmem, size = 0x9000, scoped, tag = 'internal scratch']
  #allocation2 [shape = 'f32[7,128]{1,0:T(8,128)}', space=vmem, size = 0x1000, scoped, tag = 'scratch operand']
  %s0 = inlined_call_operand.vmem [shape: bf16[2,9,8], index: 0, kind: input, shape index: {}]
  %s1 = inlined_call_operand.vmem [shape: bf16[1,3,8,128], index: 1, kind: input, shape index: {}]
  %s2 = inlined_call_operand.vmem [shape: f32[1,1,128], index: 2, kind: input, shape index: {}]
  %s3 = inlined_call_operand.vmem [shape: bf16[2,7,128], index: 3, kind: output, shape index: {}]
  %s4 = sld [smem:[#allocation0]]
  $region45: #{tpu_custom_call.1} parent=0
    _
  %s6 = ssub.s32 1, %s4
  %s7 = scalar_select 0, %s6, %s4
  loop: start=0, step=1, limit=4
  $region2: #{tpu_custom_call.1} parent=0 // loop_pre_header
    _
  $region3: #{tpu_custom_call.1} parent=0 // loop_header
    %s9 = sphi 0, %s13
    %p10 = scmp.ge.s32.totalorder %s9, 4
    %s16 = sphi 0, %s28
    %s17 = sphi 0, %s24
    %s18 = sphi 0, %s16
    %s19 = sphi 0, %s17
    %s20 = sphi 0, %s18
    %s21 = sphi 0, %s19
    %s33 = sphi 0, %s35
    %s36 = sphi 0, %s33
    %s37 = sphi 0, %s36
    %s53 = sphi 0, %s37
    %s59 = sphi 0, %s61
    %s62 = sphi 0, %s59
    %s63 = sphi 0, %s62
    %s79 = sphi 0, %s63
    %s85 = sphi 0, %s87
    %s88 = sphi 0, %s85
    %s89 = sphi 0, %s88
    %s105 = sphi 0, %s89
    %s113 = sphi 0, %s115
    %s116 = sphi 0, %s113
    %s117 = sphi 0, %s116
    %s133 = sphi 0, %s117
  $region4: #{tpu_custom_call.1} parent=0 // loop_header_branch
    %12 = sbr.rel (%p10) target = $region8
  $region5: #{tpu_custom_call.1} parent=0 // loop_body
    %s14 = ssub.s32 %s9, 1
    %s15 = ssub.s32 %s9, 2
    %s22 = sadd.s32 1, %s17
    %p23 = scmp.ge.s32.totalorder %s22, 2
    %s24 = scalar_select %p23, 0, %s22
    %s25 = sadd.s32 1, %s16
    %s26 = scalar_select %p23, %s25, %s16
    %p27 = scmp.ge.s32.totalorder %s26, 1
    %s28 = scalar_select %p27, 0, %s26
    %s29 = ssub.s32 %s17, %s24
    %s30 = ssub.s32 %s16, %s28
    %s31 = sor.u32 %s29, %s30
    %p32 = scmp.eq.s32.totalorder %s31, 0
    %s34 = sadd.s32 %s33, 1
    %s35 = scalar_select %p32, %s33, %s34
    %p38 = pneg %p32
    %p39 = scmp.eq.s32.totalorder %s9, 1
    %p40 = por %p38, %p39
    %p41 = scmp.ne.s32.totalorder %s33, %s36
    %p42 = scmp.eq.s32.totalorder %s9, 0
    %p43 = por %p41, %p42
    %p44 = scmp.ne.s32.totalorder %s33, %s36
    %p45 = scmp.eq.s32.totalorder %s14, 1
    %p46 = por %p44, %p45
    %p47 = scmp.ne.s32.totalorder %s36, %s37
    %p48 = scmp.eq.s32.totalorder %s14, 0
    %p49 = por %p47, %p48
    %p50 = scmp.ne.s32.totalorder %s36, %s37
    %p51 = scmp.eq.s32.totalorder %s15, 1
    %p52 = por %p50, %p51
    %p54 = scmp.ne.s32.totalorder %s37, %s53
    %p55 = scmp.eq.s32.totalorder %s15, 0
    %p56 = por %p54, %p55
    %s57 = ssub.s32 %s16, %s28
    %p58 = scmp.eq.s32.totalorder %s57, 0
    %s60 = sadd.s32 %s59, 1
    %s61 = scalar_select %p58, %s59, %s60
    %p64 = pneg %p58
    %p65 = scmp.eq.s32.totalorder %s9, 1
    %p66 = por %p64, %p65
    %p67 = scmp.ne.s32.totalorder %s59, %s62
    %p68 = scmp.eq.s32.totalorder %s9, 0
    %p69 = por %p67, %p68
    %p70 = scmp.ne.s32.totalorder %s59, %s62
    %p71 = scmp.eq.s32.totalorder %s14, 1
    %p72 = por %p70, %p71
    %p73 = scmp.ne.s32.totalorder %s62, %s63
    %p74 = scmp.eq.s32.totalorder %s14, 0
    %p75 = por %p73, %p74
    %p76 = scmp.ne.s32.totalorder %s62, %s63
    %p77 = scmp.eq.s32.totalorder %s15, 1
    %p78 = por %p76, %p77
    %p80 = scmp.ne.s32.totalorder %s63, %s79
    %p81 = scmp.eq.s32.totalorder %s15, 0
    %p82 = por %p80, %p81
    %s83 = ssub.s32 %s16, %s28
    %p84 = scmp.eq.s32.totalorder %s83, 0
    %s86 = sadd.s32 %s85, 1
    %s87 = scalar_select %p84, %s85, %s86
    %p90 = pneg %p84
    %p91 = scmp.eq.s32.totalorder %s9, 1
    %p92 = por %p90, %p91
    %p93 = scmp.ne.s32.totalorder %s85, %s88
    %p94 = scmp.eq.s32.totalorder %s9, 0
    %p95 = por %p93, %p94
    %p96 = scmp.ne.s32.totalorder %s85, %s88
    %p97 = scmp.eq.s32.totalorder %s14, 1
    %p98 = por %p96, %p97
    %p99 = scmp.ne.s32.totalorder %s88, %s89
    %p100 = scmp.eq.s32.totalorder %s14, 0
    %p101 = por %p99, %p100
    %p102 = scmp.ne.s32.totalorder %s88, %s89
    %p103 = scmp.eq.s32.totalorder %s15, 1
    %p104 = por %p102, %p103
    %p106 = scmp.ne.s32.totalorder %s89, %s105
    %p107 = scmp.eq.s32.totalorder %s15, 0
    %p108 = por %p106, %p107
    %s109 = ssub.s32 %s17, %s24
    %s110 = ssub.s32 %s16, %s28
    %s111 = sor.u32 %s109, %s110
    %p112 = scmp.eq.s32.totalorder %s111, 0
    %s114 = sadd.s32 %s113, 1
    %s115 = scalar_select %p112, %s113, %s114
    %p118 = pneg %p112
    %p119 = scmp.eq.s32.totalorder %s9, 1
    %p120 = por %p118, %p119
    %p121 = scmp.ne.s32.totalorder %s113, %s116
    %p122 = scmp.eq.s32.totalorder %s9, 0
    %p123 = por %p121, %p122
    %p124 = scmp.ne.s32.totalorder %s113, %s116
    %p125 = scmp.eq.s32.totalorder %s14, 1
    %p126 = por %p124, %p125
    %p127 = scmp.ne.s32.totalorder %s116, %s117
    %p128 = scmp.eq.s32.totalorder %s14, 0
    %p129 = por %p127, %p128
    %p130 = scmp.ne.s32.totalorder %s116, %s117
    %p131 = scmp.eq.s32.totalorder %s15, 1
    %p132 = por %p130, %p131
    %p134 = scmp.ne.s32.totalorder %s117, %s133
    %p135 = scmp.eq.s32.totalorder %s15, 0
    %p136 = por %p134, %p135
    %p137 = scmp.le.s32.totalorder 1, %s9
    %p138 = scmp.lt.s32.totalorder %s9, 3
    %p139 = pnand %p137, %p138
    %p140 = pneg %p139
    // Predicated region
    $region9: #{tpu_custom_call.1} parent=5 // pred_check
      _
    $region10: #{tpu_custom_call.1} parent=5 // pred_check_branch
      %142 = sbr.rel (%p139) target = $region12
    $region11: #{tpu_custom_call.1} parent=5 // pred_region
      %s143 = ssub.s32 %s9, 1
      // Predicated region
      $region13: #{tpu_custom_call.1} parent=11 // pred_check
        %p144 = pneg %p75
      $region14: #{tpu_custom_call.1} parent=11 // pred_check_branch
        %146 = sbr.rel (%p144) target = $region16
      $region15: #{tpu_custom_call.1} parent=11 // pred_region
        %p147 = scmp.lt.s32.totalorder %s18, 0
        %s148 = scalar_select %p147, %s18, 0
        %s149 = smul.addr %s148, 3
        %s150 = smul.addr %s149, 4
        %s151 = scalar_lea.vmem %s1, %s150
      $region16: #{tpu_custom_call.1} parent=11 // pred_fallthru
        _
      // Predicated region
      $region17: #{tpu_custom_call.1} parent=11 // pred_check
        %p152 = pneg %p101
      $region18: #{tpu_custom_call.1} parent=11 // pred_check_branch
        %154 = sbr.rel (%p152) target = $region20
      $region19: #{tpu_custom_call.1} parent=11 // pred_region
        %p155 = scmp.lt.s32.totalorder %s18, 0
        %s156 = scalar_select %p155, %s18, 0
        %s157 = scalar_lea.vmem %s2, %s156
      $region20: #{tpu_custom_call.1} parent=11 // pred_fallthru
        _
    $region12: #{tpu_custom_call.1} parent=5 // pred_fallthru
      _
    %p158 = scmp.lt.s32.totalorder %s9, 2
    // Predicated region
    $region21: #{tpu_custom_call.1} parent=5 // pred_check
      %p159 = pneg %p158
    $region22: #{tpu_custom_call.1} parent=5 // pred_check_branch
      %161 = sbr.rel (%p159) target = $region24
    $region23: #{tpu_custom_call.1} parent=5 // pred_region
      // Predicated region
      $region25: #{tpu_custom_call.1} parent=23 // pred_check
        %p162 = pneg %p43
      $region26: #{tpu_custom_call.1} parent=23 // pred_check_branch
        %164 = sbr.rel (%p162) target = $region28
      $region27: #{tpu_custom_call.1} parent=23 // pred_region
        %p165 = scmp.lt.s32.totalorder %s17, 1
        %s166 = scalar_select %p165, %s17, 1
        %p167 = scmp.lt.s32.totalorder %s16, 0
        %s168 = scalar_select %p167, %s16, 0
        %s169 = smul.addr %s166, 2
        %s170 = sadd.s32 %s168, %s169
        %s171 = smul.addr %s170, 4
        %s172 = scalar_lea.vmem %s0, %s171
      $region28: #{tpu_custom_call.1} parent=23 // pred_fallthru
        _
    $region24: #{tpu_custom_call.1} parent=5 // pred_fallthru
      _
    %p173 = scmp.le.s32.totalorder 1, %s9
    %p174 = scmp.lt.s32.totalorder %s9, 3
    %p175 = pnand %p173, %p174
    %p176 = pneg %p175
    // Predicated region
    $region29: #{tpu_custom_call.1} parent=5 // pred_check
      _
    $region30: #{tpu_custom_call.1} parent=5 // pred_check_branch
      %178 = sbr.rel (%p175) target = $region32
    $region31: #{tpu_custom_call.1} parent=5 // pred_region
      %s179 = ssub.s32 %s9, 1
      %p180 = scmp.lt.s32.totalorder %s19, 1
      %s181 = scalar_select %p180, %s19, 1
      %p182 = scmp.lt.s32.totalorder %s18, 0
      %s183 = scalar_select %p182, %s18, 0
      %s184 = smul.addr %s181, 2
      %s185 = sadd.s32 %s183, %s184
      %s186 = smul.addr %s185, 4
      %s187 = scalar_lea.vmem %s0, %s186
      %p188 = pneg %p49
      %p189 = pneg %p46
      %p190 = scmp.lt.s32.totalorder %s18, 0
      %s191 = scalar_select %p190, %s18, 0
      %s192 = smul.addr %s191, 3
      %s193 = smul.addr %s192, 4
      %s194 = scalar_lea.vmem %s1, %s193
      %p195 = pneg %p75
      %p196 = pneg %p72
      %p197 = scmp.lt.s32.totalorder %s18, 0
      %s198 = scalar_select %p197, %s18, 0
      %s199 = scalar_lea.vmem %s2, %s198
      %p200 = pneg %p101
      %p201 = pneg %p98
      %p202 = pneg %p129
      %p203 = pneg %p126
      %p204 = scmp.lt.s32.totalorder %s19, 1
      %s205 = scalar_select %p204, %s19, 1
      %p206 = scmp.lt.s32.totalorder %s18, 0
      %s207 = scalar_select %p206, %s18, 0
      %s208 = sadd.s32 %s207, %s205
      %s209 = smul.addr %s208, 4
      %s210 = scalar_lea.vmem %s3, %s209
      %p211 = scmp.lt.s32.totalorder %s19, 1
      %s212 = scalar_select %p211, %s19, 1
      %p213 = scmp.lt.s32.totalorder %s18, 0
      %s214 = scalar_select %p213, %s18, 0
      %s215 = smul.addr %s212, 2
      %s216 = sadd.s32 %s214, %s215
      %s217 = smul.addr %s216, 4
      %s218 = scalar_lea.vmem %s0, %s217
      %p219 = scmp.lt.s32.totalorder %s18, 0
      %s220 = scalar_select %p219, %s18, 0
      %s221 = smul.addr %s220, 3
      %s222 = smul.addr %s221, 4
      %s223 = scalar_lea.vmem %s1, %s222
      %p224 = scmp.lt.s32.totalorder %s18, 0
      %s225 = scalar_select %p224, %s18, 0
      %s226 = scalar_lea.vmem %s2, %s225
      %p227 = scmp.lt.s32.totalorder %s19, 1
      %s228 = scalar_select %p227, %s19, 1
      %p229 = scmp.lt.s32.totalorder %s18, 0
      %s230 = scalar_select %p229, %s18, 0
      %s231 = sadd.s32 %s230, %s228
      %s232 = smul.addr %s231, 4
      %s233 = scalar_lea.vmem %s3, %s232
      %v235 = vld [vmem:[%s226] sm:$0x1]
      %v237 = vperm.slane %v235, 0
      %239 = vst [vmem:[#allocation2] sm:$0x7f] %v237
      %v240 = vld [vmem:[#allocation2] sm:$0x7f]
      %v241 = vld [vmem:[%s218] sm:$0xf]
      %v242 = vld [vmem:[%s223] sm:$0xf]
      %vm243 = vcmask 64512
      %v245 = vsel %vm243, %v241, 0
      %vm247 = vcmask 1043456
      %v249 = vsel %vm247, %v242, 0
      %251 = vmatpush.bf16.msra.mxu0 0
      %252 = vmatpush.bf16.msra.mxu0 0
      %253 = vmatpush.bf16.msra.mxu0 0
      %254 = vmatpush.bf16.msra.mxu0 0
      %255 = vmatpush.bf16.msra.mxu0 0
      %256 = vmatpush.bf16.msra.mxu0 0
      %257 = vmatpush.bf16.msra.mxu0 0
      %258 = vmatpush.bf16.msra.mxu0 %v249
      %259 = vmatmul.bf16.gmra.mxu0 %v245
      %v260 = vpop.f32.mrf.mxu0
      %v261 = vadd.f32 0.0, %v260
      %v262 = vpop.f32.mrf.mxu0
      %263 = vdwg.mxu0
      %v264 = vadd.f32 %v240, %v261
      %265 = vst [vmem:[#allocation2] sm:$0x7f] %v264
      %v266 = vld [vmem:[#allocation2] sm:$0x7f]
      %v267 = vld [vmem:[%s218] sm:$0xf]
      %s268 = scalar_lea.vmem %s223, 4
      %v269 = vld [vmem:[%s268] sm:$0xf]
      %v271 = vunpack.c.l.b16 %v267
      %v272 = vpack.c.b16 %v271, %v271
      %v274 = vshrl.u32 %v272, 16
      %v276 = vshll.u32 %v272, 16
      %v278 = vrot.slane %v276, 1
      %v279 = vor.u32 %v274, %v278
      %v281 = vsel %vm243, %v279, 0
      %v284 = vsel %vm247, %v269, 0
      %286 = vmatpush.bf16.msra.mxu0 0
      %287 = vmatpush.bf16.msra.mxu0 0
      %288 = vmatpush.bf16.msra.mxu0 0
      %289 = vmatpush.bf16.msra.mxu0 0
      %290 = vmatpush.bf16.msra.mxu0 0
      %291 = vmatpush.bf16.msra.mxu0 0
      %292 = vmatpush.bf16.msra.mxu0 0
      %293 = vmatpush.bf16.msra.mxu0 %v284
      %294 = vmatmul.bf16.gmra.mxu0 %v281
      %v295 = vpop.f32.mrf.mxu0
      %v296 = vadd.f32 0.0, %v295
      %v297 = vpop.f32.mrf.mxu0
      %298 = vdwg.mxu0
      %v299 = vadd.f32 %v266, %v296
      %300 = vst [vmem:[#allocation2] sm:$0x7f] %v299
      %v301 = vld [vmem:[#allocation2] sm:$0x7f]
      %v302 = vld [vmem:[%s218] sm:$0xe]
      %v303 = vld [vmem:[%s218 + $0x4] sm:$0x1]
      %s304 = scalar_lea.vmem %s223, 8
      %v305 = vld [vmem:[%s304] sm:$0xf]
      %v308 = vunpack.c.l.b16 %v302
      %v309 = vunpack.c.l.b16 %v303
      %v310 = vpack.c.b16 %v309, %v308
      %v311 = vrot.slane %v310, 1
      %v313 = vsel %vm243, %v311, 0
      %v316 = vsel %vm247, %v305, 0
      %318 = vmatpush.bf16.msra.mxu0 0
      %319 = vmatpush.bf16.msra.mxu0 0
      %320 = vmatpush.bf16.msra.mxu0 0
      %321 = vmatpush.bf16.msra.mxu0 0
      %322 = vmatpush.bf16.msra.mxu0 0
      %323 = vmatpush.bf16.msra.mxu0 0
      %324 = vmatpush.bf16.msra.mxu0 0
      %325 = vmatpush.bf16.msra.mxu0 %v316
      %326 = vmatmul.bf16.gmra.mxu0 %v313
      %v327 = vpop.f32.mrf.mxu0
      %v328 = vadd.f32 0.0, %v327
      %v329 = vpop.f32.mrf.mxu0
      %330 = vdwg.mxu0
      %v331 = vadd.f32 %v301, %v328
      %332 = vst [vmem:[#allocation2] sm:$0x7f] %v331
      %v333 = vld [vmem:[#allocation2] sm:$0x7f]
      %vm334 = vcmp.gt.f32.partialorder %v333, 0.0
      %v335 = vmul.f32 %v333, 0.01
      %v336 = vsel %vm334, %v333, %v335
      %v337 = vpack.c.bf16 %v336, %v336
      %vm338 = vcmask 1043456
      %vm339 = vsmask.f32 3328
      %vm340 = vmand %vm338, %vm339
      %v341 = vld [vmem:[%s233] sm:$0xf]
      %v342 = vsel %vm340, %v337, %v341
      %343 = vst [vmem:[%s233] sm:$0xf] %v342
      %p344 = scmp.lt.s32.totalorder %s19, 1
      %s345 = scalar_select %p344, %s19, 1
      %p346 = scmp.lt.s32.totalorder %s18, 0
      %s347 = scalar_select %p346, %s18, 0
      %s348 = sadd.s32 %s347, %s345
      %s349 = smul.addr %s348, 4
      %s350 = scalar_lea.vmem %s3, %s349
      // Predicated region
      $region33: #{tpu_custom_call.1} parent=31 // pred_check
        %p351 = pneg %p126
      $region34: #{tpu_custom_call.1} parent=31 // pred_check_branch
        %353 = sbr.rel (%p351) target = $region36
      $region35: #{tpu_custom_call.1} parent=31 // pred_region
        _
      $region36: #{tpu_custom_call.1} parent=31 // pred_fallthru
        _
    $region32: #{tpu_custom_call.1} parent=5 // pred_fallthru
      _
    %p354 = scmp.le.s32.totalorder 2, %s9
    // Predicated region
    $region37: #{tpu_custom_call.1} parent=5 // pred_check
      %p355 = pneg %p354
    $region38: #{tpu_custom_call.1} parent=5 // pred_check_branch
      %357 = sbr.rel (%p355) target = $region40
    $region39: #{tpu_custom_call.1} parent=5 // pred_region
      %s358 = ssub.s32 %s9, 2
      // Predicated region
      $region41: #{tpu_custom_call.1} parent=39 // pred_check
        %p359 = pneg %p132
      $region42: #{tpu_custom_call.1} parent=39 // pred_check_branch
        %361 = sbr.rel (%p359) target = $region44
      $region43: #{tpu_custom_call.1} parent=39 // pred_region
        %p362 = scmp.lt.s32.totalorder %s21, 1
        %s363 = scalar_select %p362, %s21, 1
        %p364 = scmp.lt.s32.totalorder %s20, 0
        %s365 = scalar_select %p364, %s20, 0
        %s366 = sadd.s32 %s365, %s363
        %s367 = smul.addr %s366, 4
        %s368 = scalar_lea.vmem %s3, %s367
      $region44: #{tpu_custom_call.1} parent=39 // pred_fallthru
        _
    $region40: #{tpu_custom_call.1} parent=5 // pred_fallthru
      _
  $region6: #{tpu_custom_call.1} parent=0 // loop_footer
    %s13 = sadd.s32 1, %s9
  $region7: #{tpu_custom_call.1} parent=0 // loop_footer_branch
    %8 = sbr.rel target = $region3
  $region8: #{tpu_custom_call.1} parent=0 // loop_exit
    _

</llo_original>
